<compile_context>
chip_gen: v7x
topology: tpu7x:2x2x1
jax: 0.10.0
libtpu: 0.0.40
codegen_flags: <defaults>
</compile_context>

<pallas_src>
import functools
import math

import jax
import jax.numpy as jnp
from jax.experimental import pallas as pl
from jax.experimental.pallas import tpu as pltpu

_SQRT_2_OVER_PI = math.sqrt(2.0 / math.pi)
_TWO_SQRT_2_OVER_PI = 2.0 * _SQRT_2_OVER_PI
_LANE = 128


def _gelu_kernel(x_ref, o_ref):
    xf = x_ref[...].astype(jnp.float32)
    z2 = _TWO_SQRT_2_OVER_PI * (xf + 0.044715 * (xf * xf * xf))
    # 0.5 * (1 + tanh(z)) == sigmoid(2z): one EUP op, two fewer VPU ops.
    o_ref[...] = (xf * jax.nn.sigmoid(z2)).astype(o_ref.dtype)


def _gelu_jnp(x):
    # Reference / <128-element tail path (same math as the kernel & the module).
    xf = x.astype(jnp.float32)
    y = 0.5 * xf * (1.0 + jnp.tanh(_SQRT_2_OVER_PI * (xf + 0.044715 * xf * xf * xf)))
    return y.astype(x.dtype)


def _sublane(dtype) -> int:
    # Sublane tiling requirement by element width (packed dtypes need more rows).
    return {4: 8, 2: 16, 1: 32}.get(jnp.dtype(dtype).itemsize, 8)


def _round_up(a: int, b: int) -> int:
    return ((a + b - 1) // b) * b


@functools.lru_cache(maxsize=1)
def _chip_config():
    """(max_block_rows_f32, vmem_limit_bytes, num_tensorcores) for this chip."""
    vmem_capacity = 64 << 20  # conservative fallback (v7x-sized)
    try:
        info = pltpu.get_tpu_info()
        vmem_capacity = int(getattr(info, "vmem_capacity_bytes", vmem_capacity))
    except Exception:
        pass
    num_cores = 1
    try:
        kind = str(jax.devices()[0].device_kind).lower()
        if "v7" in kind:  # v7x: 2 TensorCores per chip share the grid
            num_cores = 2
    except Exception:
        pass
    if vmem_capacity <= (64 << 20):
        # v7x-class: fast HBM, smaller VMEM -> big blocks to hide per-step cost.
        target_block_bytes = 6 << 20
    else:
        # v5e / v6e (128 MiB VMEM): ~4 MiB blocks put per-step overhead at a few %.
        target_block_bytes = 4 << 20
    # Intermediates are f32, so bound block rows by f32 bytes regardless of
    # the input dtype (protects bf16/int8 from spill-bound regimes).
    max_block_rows = max(target_block_bytes // (_LANE * 4), 8)
    vmem_limit = min(vmem_capacity - (16 << 20), 64 << 20)
    vmem_limit = max(vmem_limit, 32 << 20)
    return max_block_rows, vmem_limit, num_cores


def _pick_block_rows(rows: int, sublane: int, num_cores: int, max_block_rows: int) -> int:
    max_block_rows = max((max_block_rows // sublane) * sublane, sublane)
    if num_cores > 1:
        min_steps = 2 * num_cores  # >= 2 blocks per TensorCore
        if rows >= min_steps * sublane:
            steps = max(pl.cdiv(rows, max_block_rows), min_steps)
            steps = _round_up(steps, num_cores)  # even split across cores
            return max(_round_up(pl.cdiv(rows, steps), sublane), sublane)
        # tiny input on a multi-core chip: one block is still the cheapest
    if rows <= max_block_rows:
        return rows  # single full-extent block (no masking, no padding)
    return max_block_rows


def _run_slab(slab, block_rows: int, vmem_limit: int, alias_input: bool):
    rows, lane = slab.shape
    grid = (pl.cdiv(rows, block_rows),)
    n = rows * lane
    itemsize = jnp.dtype(slab.dtype).itemsize
    cost = pl.CostEstimate(
        flops=8 * n, transcendentals=n, bytes_accessed=2 * n * itemsize
    )
    return pl.pallas_call(
        _gelu_kernel,
        out_shape=jax.ShapeDtypeStruct((rows, lane), slab.dtype),
        grid=grid,
        in_specs=[pl.BlockSpec((block_rows, lane), lambda i: (i, 0))],
        out_specs=pl.BlockSpec((block_rows, lane), lambda i: (i, 0)),
        compiler_params=pltpu.CompilerParams(
            dimension_semantics=("parallel",),
            vmem_limit_bytes=int(vmem_limit),
        ),
        cost_estimate=cost,
        # Alias only when the caller donates its buffer; otherwise XLA inserts a copy.
        input_output_aliases={0: 0} if alias_input else {},
    )(slab)


def gelu_pallas(x, *, alias_input: bool = False):
    """Tanh-approx GELU (matches the PyTorch module) via a Pallas TPU kernel."""
    orig_shape = x.shape
    n = x.size
    if n == 0:
        return x

    max_block_rows, vmem_limit, num_cores = _chip_config()
    sublane = _sublane(x.dtype)

    flat = x.reshape(-1)
    n_tail = n % _LANE
    n_main = n - n_tail

    parts = []
    if n_main > 0:
        rows = n_main // _LANE
        # No-pad lane-dense slab; reshape is free, the (optional) prefix slice is
        # the only extra copy and happens only for ragged (n % 128 != 0) sizes.
        slab = (flat if n_tail == 0 else flat[:n_main]).reshape(rows, _LANE)
        block_rows = _pick_block_rows(rows, sublane, num_cores, max_block_rows)
        out = _run_slab(slab, block_rows, vmem_limit,
                        alias_input and n_tail == 0)
        if n_tail == 0:
            return out.reshape(orig_shape)
        parts.append(out.reshape(-1))
    if n_tail > 0:
        # <128-element tail: negligible work, same formula in plain JAX.
        parts.append(_gelu_jnp(flat[n_main:]))

    out_flat = parts[0] if len(parts) == 1 else jnp.concatenate(parts)
    return out_flat.reshape(orig_shape)


if __name__ == "__main__":
    key = jax.random.PRNGKey(0)

    # Main test: NCHW-ish input [2, 4, 16, 16] (no-pad fast path, single block).
    x = jax.random.normal(key, (2, 4, 16, 16), dtype=jnp.float32)
    y = jax.block_until_ready(gelu_pallas(x))
    y_ref = _gelu_jnp(x)
    assert y.shape == x.shape and y.dtype == x.dtype
    assert jnp.allclose(y, y_ref, atol=1e-4, rtol=1e-4), "mismatch vs reference (fast path)"

    # Ragged test: 231 elements -> 128-aligned prefix through the kernel + tail path.
    x2 = jax.random.normal(jax.random.PRNGKey(1), (3, 7, 11), dtype=jnp.float32)
    y2 = jax.block_until_ready(gelu_pallas(x2))
    assert jnp.allclose(y2, _gelu_jnp(x2), atol=1e-4, rtol=1e-4), "mismatch vs reference (ragged path)"

    # bf16 test: row count (27) not a multiple of the bf16 sublane requirement,
    # handled with no padding (full-extent / masked blocks).
    x3 = jax.random.normal(jax.random.PRNGKey(2), (3, 9, 128), dtype=jnp.bfloat16)
    y3 = jax.block_until_ready(gelu_pallas(x3))
    assert jnp.allclose(
        y3.astype(jnp.float32), _gelu_jnp(x3).astype(jnp.float32), atol=2e-2, rtol=2e-2
    ), "mismatch vs reference (bf16 path)"

    print("KERNEL_OK")
</pallas_src>

<mosaic_0001>
module attributes {stable_mosaic.version = 11 : i64} {
  func.func @_gelu_kernel(%arg0: i32, %arg1: memref<16x128xf32, #tpu.memory_space<vmem>>, %arg2: memref<16x128xf32, #tpu.memory_space<vmem>>) attributes {dimension_semantics = [#tpu.dimension_semantics<parallel>], iteration_bounds = array<i64: 1>, scalar_prefetch = 0 : i64, scratch_operands = 0 : i64, tpu.core_type = #tpu.core_type<tc>, window_params = [{transform_indices = @transform_0, window_bounds = array<i64: 16, 128>}, {transform_indices = @transform_1, window_bounds = array<i64: 16, 128>}]} {
    %c0 = arith.constant 0 : index
    %c0_0 = arith.constant 0 : index
    %0 = vector.load %arg1[%c0, %c0_0] : memref<16x128xf32, #tpu.memory_space<vmem>>, vector<16x128xf32>
    %1 = arith.mulf %0, %0 : vector<16x128xf32>
    %2 = arith.mulf %1, %0 : vector<16x128xf32>
    %cst = arith.constant 4.471500e-02 : f32
    %3 = vector.broadcast %cst : f32 to vector<16x128xf32>
    %4 = arith.mulf %3, %2 : vector<16x128xf32>
    %5 = arith.addf %0, %4 : vector<16x128xf32>
    %cst_1 = arith.constant 1.59576917 : f32
    %6 = vector.broadcast %cst_1 : f32 to vector<16x128xf32>
    %7 = arith.mulf %6, %5 : vector<16x128xf32>
    %8 = arith.negf %7 : vector<16x128xf32>
    %9 = math.exp %8 : vector<16x128xf32>
    %cst_2 = arith.constant 1.000000e+00 : f32
    %10 = vector.broadcast %cst_2 : f32 to vector<16x128xf32>
    %11 = arith.addf %10, %9 : vector<16x128xf32>
    %12 = arith.divf %10, %11 : vector<16x128xf32>
    %13 = arith.mulf %0, %12 : vector<16x128xf32>
    %c0_3 = arith.constant 0 : index
    %c0_4 = arith.constant 0 : index
    %14 = vector.load %arg2[%c0_3, %c0_4] : memref<16x128xf32, #tpu.memory_space<vmem>>, vector<16x128xf32>
    tpu.vector_store %arg2[%c0_3, %c0_4], %13 {strides = array<i32>} : memref<16x128xf32, #tpu.memory_space<vmem>>, vector<16x128xf32>,
    return
  }
  func.func @transform_0(%arg0: i32) -> (i32, i32) {
    %c0_i32 = arith.constant 0 : i32
    %c0_i32_0 = arith.constant 0 : i32
    return %arg0, %c0_i32 : i32, i32
  }
  func.func @transform_1(%arg0: i32) -> (i32, i32) {
    %c0_i32 = arith.constant 0 : i32
    %c0_i32_0 = arith.constant 0 : i32
    return %arg0, %c0_i32 : i32, i32
  }
}

</mosaic_0001>

<llo_original>
// kernel: tpu_custom_call.1
$region0: #{tpu_custom_call.1}
  #allocation0 [shape = 'u32[]', space=smem, size = 0x4, offset = 0x4, fixed_abs, tag = 'smem constant byte address 0x4 - core index']
  #allocation1 [shape = 'u32[144,128]{1,0:T(1,128)}', space=vmem, size = 0x12000, scoped, tag = 'internal scratch']
  %s0 = inlined_call_operand.hbm [shape: f32[16,128], index: 0, kind: input, shape index: {}]
  %s1 = inlined_call_operand.hbm [shape: f32[16,128], index: 1, kind: output, shape index: {}]
  %s2 = sld [smem:[#allocation0]]
  $region18: #{tpu_custom_call.1} parent=0
    _
  %s4 = ssub.s32 1, %s2
  %s5 = scalar_select 0, %s4, %s2
  $region1: #{tpu_custom_call.1} parent=0
    #allocation2 [shape = 'u8[8192]{0}', space=vmem, size = 0x2000, scoped, tag = 'input window, operand 0, single buffered']
    #allocation3 [shape = 's32[1]{0}', space=sflag, size = 0x4, scoped, tag = 'scoped memory for tpu_custom_call.1']
    #allocation4 [shape = 's32[1]{0}', space=sflag, size = 0x4, scoped, tag = 'scoped memory for tpu_custom_call.1']
    #allocation5 [shape = 'u8[8192]{0}', space=vmem, size = 0x2000, scoped, tag = 'output window, operand 0, single buffered']
    %6 = vsyncpa [#allocation3], 0
    %7 = vsyncpa [#allocation4], 0
    // Predicated region
    $region2: #{tpu_custom_call.1} parent=1 // pred_check
      _
    $region3: #{tpu_custom_call.1} parent=1 // pred_check_branch
      %9 = sbr.rel (0) target = $region5
    $region4: #{tpu_custom_call.1} parent=1 // pred_region
      %s11 = ssub.s32 256, 256
      %12 = vsyncadd [#allocation3], %s11
      %s13 = sshll.u32 [#allocation2], 4
      %s14 = int_to_ptr.vmem [resolvable:$true] %s13
      %19 = dma.hbm_to_vmem [thread:$0]  %s0, 256, %s14, [#allocation3], 128, 128, 8
    $region5: #{tpu_custom_call.1} parent=1 // pred_fallthru
      _
    // Predicated region
    $region6: #{tpu_custom_call.1} parent=1 // pred_check
      _
    $region7: #{tpu_custom_call.1} parent=1 // pred_check_branch
      %21 = sbr.rel (0) target = $region9
    $region8: #{tpu_custom_call.1} parent=1 // pred_region
      %22 = dma.done [#allocation3], 256
    $region9: #{tpu_custom_call.1} parent=1 // pred_fallthru
      _
    %v23 = vld [vmem:[#allocation2] sm:$0xff]
    %v24 = vld [vmem:[#allocation2 + $0x8] sm:$0xff]
    %v25 = vmul.f32 %v23, %v23
    %v26 = vmul.f32 %v24, %v24
    %v27 = vmul.f32 %v25, %v23
    %v28 = vmul.f32 %v26, %v24
    %v29 = vmul.f32 %v27, 0.044715
    %v30 = vmul.f32 %v28, 0.044715
    %v31 = vadd.f32 %v23, %v29
    %v32 = vadd.f32 %v24, %v30
    %v33 = vmul.f32 %v31, 1.5957692
    %v34 = vmul.f32 %v32, 1.5957692
    %v35 = vxor.u32 %v33, 2147483648
    %v36 = vxor.u32 %v34, 2147483648
    %v37 = vmul.f32 %v35, 1.442695
    %v38 = vpow.pop %v37
    %v39 = vmul.f32 %v36, 1.442695
    %v40 = vpow.pop %v39
    %v41 = vadd.f32 %v38, 1.0
    %v42 = vadd.f32 %v40, 1.0
    %v43 = vrcp.pop %v41
    %v44 = vmul.f32 1.0, %v43
    %v45 = vrcp.pop %v42
    %v46 = vmul.f32 1.0, %v45
    %v47 = vmul.f32 %v23, %v44
    %v48 = vmul.f32 %v24, %v46
    %49 = vst [vmem:[#allocation5] sm:$0xff] %v47
    %50 = vst [vmem:[#allocation5 + $0x8] sm:$0xff] %v48
    // Predicated region
    $region10: #{tpu_custom_call.1} parent=1 // pred_check
      _
    $region11: #{tpu_custom_call.1} parent=1 // pred_check_branch
      %52 = sbr.rel (0) target = $region13
    $region12: #{tpu_custom_call.1} parent=1 // pred_region
      %s54 = ssub.s32 256, 256
      %55 = vsyncadd [#allocation4], %s54
      %s56 = sshll.u32 [#allocation5], 4
      %s57 = int_to_ptr.vmem [resolvable:$true] %s56
      %62 = dma.vmem_to_hbm [thread:$0]  %s57, 256, %s1, [#allocation4], 128, 128, 8
    $region13: #{tpu_custom_call.1} parent=1 // pred_fallthru
      _
    // Predicated region
    $region14: #{tpu_custom_call.1} parent=1 // pred_check
      _
    $region15: #{tpu_custom_call.1} parent=1 // pred_check_branch
      %64 = sbr.rel (0) target = $region17
    $region16: #{tpu_custom_call.1} parent=1 // pred_region
      %65 = dma.done [#allocation4], 256
    $region17: #{tpu_custom_call.1} parent=1 // pred_fallthru
      _
    %66 = vsyncpa [#allocation3], 1
    %67 = vsyncpa [#allocation4], 1

</llo_original>
